<compile_context>
chip_gen: v7x
topology: tpu7x:2x2x1
jax: 0.10.0
libtpu: 0.0.40
codegen_flags: <defaults>
</compile_context>

<pallas_src>
import math

import numpy as np
import jax
import jax.numpy as jnp
from jax.experimental import pallas as pl
from jax.experimental.pallas import tpu as pltpu

_LANES = 128
_MAX_TILE_ROWS = 512  # (512, 128) f32 tile = 256 KiB; x2 buffers well under VMEM


def _multi_loss_kernel(scal_ref, logits_ref, targets_ref, skip_ref, out_ref,
                       acc_ref, cel2_ref):
    pid = pl.program_id(0)
    nblk = pl.num_programs(0)

    # ---- hot loop: one lane-dense tile of the skip slab -> partial sum -----
    tile_sum = jnp.sum(skip_ref[...].astype(jnp.float32), keepdims=True)  # (1,1)

    @pl.when(pid == 0)
    def _init():
        acc_ref[...] = jnp.zeros_like(acc_ref)

        # ---- cross-entropy + L2 on the logits: executed exactly once -------
        logits = logits_ref[...].astype(jnp.float32)                 # (N, C)
        n, c = logits.shape
        m = jnp.max(logits, axis=-1, keepdims=True)                  # (N, 1)
        lse = m + jnp.log(jnp.sum(jnp.exp(logits - m), axis=-1, keepdims=True))
        tgt = targets_ref[...]                                       # (N, 1) int32
        col = jax.lax.broadcasted_iota(jnp.int32, (n, c), 1)         # (N, C)
        onehot = (col == tgt).astype(jnp.float32)
        picked = jnp.sum(logits * onehot, axis=-1, keepdims=True)    # (N, 1)
        ce_sum = jnp.sum(lse - picked, keepdims=True)                # (1, 1)
        l2_sum = jnp.sum(logits * logits, keepdims=True)             # (1, 1)
        beta = scal_ref[1]
        cel2_ref[...] = ce_sum * (1.0 / n) + beta * (l2_sum * (1.0 / (n * c)))

    # accumulate the per-tile skip partial sum (single divide at finalize)
    acc_ref[...] += tile_sum

    @pl.when(pid == nblk - 1)
    def _finalize():
        alpha = scal_ref[0]
        inv_skip_count = scal_ref[2]   # 1 / true element count (ignores padding)
        out_ref[...] = cel2_ref[...] + alpha * (acc_ref[...] * inv_skip_count)


def multi_loss(outputs, targets, skip_connections, alpha, beta, *, skip_index):
    """outputs: (N, C) f32 logits; targets: (N,) int labels;
    skip_connections: list of arrays (any shape); alpha/beta: python floats."""
    skip = skip_connections[skip_index]

    # --- host-side glue: flatten + zero-pad skip tensor to lane-dense tiles ---
    flat = skip.reshape(-1)
    total = flat.shape[0]
    rows = -(-total // _LANES)
    if rows <= _MAX_TILE_ROWS:
        tile_rows = max(rows, 1)
        padded_rows = tile_rows
    else:
        tile_rows = _MAX_TILE_ROWS
        padded_rows = -(-rows // _MAX_TILE_ROWS) * _MAX_TILE_ROWS
    pad = padded_rows * _LANES - total
    if pad:
        flat = jnp.pad(flat, (0, pad))          # zeros don't change the sum
    skip2d = flat.reshape(padded_rows, _LANES)
    num_blocks = padded_rows // tile_rows

    n, c = outputs.shape
    targets2d = targets.astype(jnp.int32).reshape(n, 1)
    # [alpha, beta, 1/true_skip_count] in SMEM
    scal = jnp.array([alpha, beta, 1.0 / float(total)], dtype=jnp.float32)

    padded_total = padded_rows * _LANES
    cost = pl.CostEstimate(
        flops=2 * padded_total + 8 * n * c,
        transcendentals=n * c + n,
        bytes_accessed=4 * (padded_total + n * c + n) + 4,
    )

    out = pl.pallas_call(
        _multi_loss_kernel,
        out_shape=jax.ShapeDtypeStruct((1, 1), jnp.float32),
        grid_spec=pltpu.PrefetchScalarGridSpec(
            num_scalar_prefetch=0,
            grid=(num_blocks,),
            in_specs=[
                pl.BlockSpec(memory_space=pltpu.SMEM),   # [alpha, beta, 1/count]
                pl.BlockSpec(memory_space=pltpu.VMEM),   # logits (resident)
                pl.BlockSpec(memory_space=pltpu.VMEM),   # targets (N,1) (resident)
                pl.BlockSpec((tile_rows, _LANES), lambda i: (i, 0)),  # skip tiles
            ],
            out_specs=pl.BlockSpec(memory_space=pltpu.VMEM),
            scratch_shapes=[
                pltpu.VMEM((1, 1), jnp.float32),   # running skip sum
                pltpu.VMEM((1, 1), jnp.float32),   # ce + beta*l2 carry
            ],
        ),
        compiler_params=pltpu.CompilerParams(
            dimension_semantics=("arbitrary",),
        ),
        cost_estimate=cost,
    )(scal, outputs, targets2d, skip2d)
    return out[0, 0]


if __name__ == "__main__":
    key = jax.random.PRNGKey(0)
    k1, k2, k3, k4, k5 = jax.random.split(key, 5)

    # shapes consistent with the module's forward
    N, C = 8, 32                      # logits (batch, num_classes)
    B, CH, H, W = 2, 4, 16, 16        # skip-connection feature maps (NCHW)

    outputs = jax.random.normal(k1, (N, C), dtype=jnp.float32)
    targets = jax.random.randint(k2, (N,), 0, C, dtype=jnp.int32)
    skip_connections = [
        jax.random.normal(k3, (B, CH, H, W), dtype=jnp.float32),
        jax.random.normal(k4, (B, CH, H, W), dtype=jnp.float32),
        jax.random.normal(k5, (B, CH, H, W), dtype=jnp.float32),
    ]

    # nn.Parameter(torch.tensor(0.5)) for both alpha and beta
    alpha, beta = 0.5, 0.5

    # PyTorch picks the skip tensor with np.random.randint at call time;
    # reproduce deterministically on the host (glue, not kernel work).
    np.random.seed(0)
    skip_index = int(np.random.randint(0, len(skip_connections)))

    loss = multi_loss(outputs, targets, skip_connections, alpha, beta,
                      skip_index=skip_index)
    jax.block_until_ready(loss)

    # sanity check vs. pure-JAX reference
    logp = jax.nn.log_softmax(outputs, axis=-1)
    ce_ref = -jnp.mean(logp[jnp.arange(N), targets])
    ref = ce_ref + alpha * jnp.mean(skip_connections[skip_index]) \
        + beta * jnp.mean(outputs ** 2)
    assert jnp.allclose(loss, ref, rtol=1e-5, atol=1e-5), (loss, ref)

    print("KERNEL_OK")
</pallas_src>

<mosaic_0001>
module attributes {stable_mosaic.version = 11 : i64} {
  func.func @_multi_loss_kernel(%arg0: i32, %arg1: memref<3xf32, #tpu.memory_space<smem>>, %arg2: memref<8x32xf32, #tpu.memory_space<vmem>>, %arg3: memref<8x1xi32, #tpu.memory_space<vmem>>, %arg4: memref<16x128xf32, #tpu.memory_space<vmem>>, %arg5: memref<1x1xf32, #tpu.memory_space<vmem>>, %arg6: memref<1x1xf32, #tpu.memory_space<vmem>>, %arg7: memref<1x1xf32, #tpu.memory_space<vmem>>) attributes {dimension_semantics = [#tpu.dimension_semantics<arbitrary>], iteration_bounds = array<i64: 1>, scalar_prefetch = 0 : i64, scratch_operands = 2 : i64, tpu.core_type = #tpu.core_type<tc>, window_params = [{transform_indices = @transform_0, window_bounds = array<i64: 3>}, {pipeline_mode = #tpu.pipeline_mode<synchronous>, transform_indices = @transform_1, window_bounds = array<i64: 8, 32>}, {pipeline_mode = #tpu.pipeline_mode<synchronous>, transform_indices = @transform_2, window_bounds = array<i64: 8, 1>}, {transform_indices = @transform_3, window_bounds = array<i64: 16, 128>}, {pipeline_mode = #tpu.pipeline_mode<synchronous>, transform_indices = @transform_4, window_bounds = array<i64: 1, 1>}]} {
    %c0 = arith.constant 0 : index
    %c0_0 = arith.constant 0 : index
    %0 = vector.load %arg4[%c0, %c0_0] : memref<16x128xf32, #tpu.memory_space<vmem>>, vector<16x128xf32>
    %1 = vector.shape_cast %0 : vector<16x128xf32> to vector<1x16x128xf32>
    %cst = arith.constant dense<0.000000e+00> : vector<1xf32>
    %2 = vector.multi_reduction <add>, %1, %cst [1, 2] : vector<1x16x128xf32> to vector<1xf32>
    %3 = vector.shape_cast %2 : vector<1xf32> to vector<1x1x1xf32>
    %4 = vector.extract %3[0, 0, 0] : f32 from vector<1x1x1xf32>
    %5 = vector.broadcast %4 : f32 to vector<1x1xf32>
    %c0_i32 = arith.constant 0 : i32
    %6 = arith.cmpi eq, %arg0, %c0_i32 : i32
    %7 = arith.extui %6 : i1 to i32
    %c0_i32_1 = arith.constant 0 : i32
    %8 = arith.cmpi ne, %7, %c0_i32_1 : i32
    scf.if %8 {
      %cst_8 = arith.constant 0.000000e+00 : f32
      %15 = vector.broadcast %cst_8 : f32 to vector<1x1xf32>
      %c0_9 = arith.constant 0 : index
      %c0_10 = arith.constant 0 : index
      %16 = vector.load %arg6[%c0_9, %c0_10] : memref<1x1xf32, #tpu.memory_space<vmem>>, vector<1x1xf32>
      tpu.vector_store %arg6[%c0_9, %c0_10], %15 {strides = array<i32>} : memref<1x1xf32, #tpu.memory_space<vmem>>, vector<1x1xf32>,
      %c0_11 = arith.constant 0 : index
      %c0_12 = arith.constant 0 : index
      %17 = vector.load %arg2[%c0_11, %c0_12] : memref<8x32xf32, #tpu.memory_space<vmem>>, vector<8x32xf32>
      %cst_13 = arith.constant dense<0xFF800000> : vector<8xf32>
      %18 = vector.multi_reduction <maximumf>, %17, %cst_13 [1] : vector<8x32xf32> to vector<8xf32>
      %19 = vector.shape_cast %18 : vector<8xf32> to vector<8x1xf32>
      %20 = vector.broadcast %19 : vector<8x1xf32> to vector<8x32xf32>
      %21 = arith.subf %17, %20 : vector<8x32xf32>
      %22 = math.exp %21 : vector<8x32xf32>
      %cst_14 = arith.constant dense<0.000000e+00> : vector<8xf32>
      %23 = vector.multi_reduction <add>, %22, %cst_14 [1] : vector<8x32xf32> to vector<8xf32>
      %24 = vector.shape_cast %23 : vector<8xf32> to vector<8x1xf32>
      %25 = math.log %24 : vector<8x1xf32>
      %26 = arith.addf %19, %25 : vector<8x1xf32>
      %c0_15 = arith.constant 0 : index
      %c0_16 = arith.constant 0 : index
      %27 = vector.load %arg3[%c0_15, %c0_16] : memref<8x1xi32, #tpu.memory_space<vmem>>, vector<8x1xi32>
      %28 = tpu.iota {dimensions = array<i32: 1>} : vector<8x32xi32>
      %29 = vector.broadcast %27 : vector<8x1xi32> to vector<8x32xi32>
      %30 = arith.cmpi eq, %28, %29 : vector<8x32xi32>
      %31 = arith.extui %30 : vector<8x32xi1> to vector<8x32xi32>
      %32 = arith.sitofp %31 : vector<8x32xi32> to vector<8x32xf32>
      %33 = arith.mulf %17, %32 : vector<8x32xf32>
      %cst_17 = arith.constant dense<0.000000e+00> : vector<8xf32>
      %34 = vector.multi_reduction <add>, %33, %cst_17 [1] : vector<8x32xf32> to vector<8xf32>
      %35 = vector.shape_cast %34 : vector<8xf32> to vector<8x1xf32>
      %36 = arith.subf %26, %35 : vector<8x1xf32>
      %37 = vector.shape_cast %36 : vector<8x1xf32> to vector<1x8x1xf32>
      %cst_18 = arith.constant dense<0.000000e+00> : vector<1xf32>
      %38 = vector.multi_reduction <add>, %37, %cst_18 [1, 2] : vector<1x8x1xf32> to vector<1xf32>
      %39 = vector.shape_cast %38 : vector<1xf32> to vector<1x1x1xf32>
      %40 = vector.extract %39[0, 0, 0] : f32 from vector<1x1x1xf32>
      %41 = vector.broadcast %40 : f32 to vector<1x1xf32>
      %42 = arith.mulf %17, %17 : vector<8x32xf32>
      %43 = vector.shape_cast %42 : vector<8x32xf32> to vector<1x8x32xf32>
      %cst_19 = arith.constant dense<0.000000e+00> : vector<1xf32>
      %44 = vector.multi_reduction <add>, %43, %cst_19 [1, 2] : vector<1x8x32xf32> to vector<1xf32>
      %45 = vector.shape_cast %44 : vector<1xf32> to vector<1x1x1xf32>
      %46 = vector.extract %45[0, 0, 0] : f32 from vector<1x1x1xf32>
      %47 = vector.broadcast %46 : f32 to vector<1x1xf32>
      %c1 = arith.constant 1 : index
      %48 = memref.load %arg1[%c1] : memref<3xf32, #tpu.memory_space<smem>>
      %cst_20 = arith.constant 1.250000e-01 : f32
      %49 = vector.broadcast %cst_20 : f32 to vector<1x1xf32>
      %50 = arith.mulf %41, %49 : vector<1x1xf32>
      %cst_21 = arith.constant 3.906250e-03 : f32
      %51 = vector.broadcast %cst_21 : f32 to vector<1x1xf32>
      %52 = arith.mulf %47, %51 : vector<1x1xf32>
      %53 = vector.broadcast %48 : f32 to vector<1x1xf32>
      %54 = arith.mulf %53, %52 : vector<1x1xf32>
      %55 = arith.addf %50, %54 : vector<1x1xf32>
      %c0_22 = arith.constant 0 : index
      %c0_23 = arith.constant 0 : index
      %56 = vector.load %arg7[%c0_22, %c0_23] : memref<1x1xf32, #tpu.memory_space<vmem>>, vector<1x1xf32>
      tpu.vector_store %arg7[%c0_22, %c0_23], %55 {strides = array<i32>} : memref<1x1xf32, #tpu.memory_space<vmem>>, vector<1x1xf32>,
    } else {
    }
    %c0_2 = arith.constant 0 : index
    %c0_3 = arith.constant 0 : index
    %9 = vector.load %arg6[%c0_2, %c0_3] : memref<1x1xf32, #tpu.memory_space<vmem>>, vector<1x1xf32>
    %10 = arith.addf %9, %5 : vector<1x1xf32>
    %c0_4 = arith.constant 0 : index
    %c0_5 = arith.constant 0 : index
    %11 = vector.load %arg6[%c0_4, %c0_5] : memref<1x1xf32, #tpu.memory_space<vmem>>, vector<1x1xf32>
    tpu.vector_store %arg6[%c0_4, %c0_5], %10 {strides = array<i32>} : memref<1x1xf32, #tpu.memory_space<vmem>>, vector<1x1xf32>,
    %c0_i32_6 = arith.constant 0 : i32
    %12 = arith.cmpi eq, %arg0, %c0_i32_6 : i32
    %13 = arith.extui %12 : i1 to i32
    %c0_i32_7 = arith.constant 0 : i32
    %14 = arith.cmpi ne, %13, %c0_i32_7 : i32
    scf.if %14 {
      %c0_8 = arith.constant 0 : index
      %15 = memref.load %arg1[%c0_8] : memref<3xf32, #tpu.memory_space<smem>>
      %c2 = arith.constant 2 : index
      %16 = memref.load %arg1[%c2] : memref<3xf32, #tpu.memory_space<smem>>
      %c0_9 = arith.constant 0 : index
      %c0_10 = arith.constant 0 : index
      %17 = vector.load %arg7[%c0_9, %c0_10] : memref<1x1xf32, #tpu.memory_space<vmem>>, vector<1x1xf32>
      %c0_11 = arith.constant 0 : index
      %c0_12 = arith.constant 0 : index
      %18 = vector.load %arg6[%c0_11, %c0_12] : memref<1x1xf32, #tpu.memory_space<vmem>>, vector<1x1xf32>
      %19 = vector.broadcast %16 : f32 to vector<1x1xf32>
      %20 = arith.mulf %18, %19 : vector<1x1xf32>
      %21 = vector.broadcast %15 : f32 to vector<1x1xf32>
      %22 = arith.mulf %21, %20 : vector<1x1xf32>
      %23 = arith.addf %17, %22 : vector<1x1xf32>
      %c0_13 = arith.constant 0 : index
      %c0_14 = arith.constant 0 : index
      %24 = vector.load %arg5[%c0_13, %c0_14] : memref<1x1xf32, #tpu.memory_space<vmem>>, vector<1x1xf32>
      tpu.vector_store %arg5[%c0_13, %c0_14], %23 {strides = array<i32>} : memref<1x1xf32, #tpu.memory_space<vmem>>, vector<1x1xf32>,
    } else {
    }
    return
  }
  func.func @transform_0(%arg0: i32) -> i32 {
    %c0_i32 = arith.constant 0 : i32
    %c0_i32_0 = arith.constant 0 : i32
    return %c0_i32 : i32
  }
  func.func @transform_1(%arg0: i32) -> (i32, i32) {
    %c0_i32 = arith.constant 0 : i32
    %c0_i32_0 = arith.constant 0 : i32
    %c0_i32_1 = arith.constant 0 : i32
    return %c0_i32, %c0_i32_0 : i32, i32
  }
  func.func @transform_2(%arg0: i32) -> (i32, i32) {
    %c0_i32 = arith.constant 0 : i32
    %c0_i32_0 = arith.constant 0 : i32
    %c0_i32_1 = arith.constant 0 : i32
    return %c0_i32, %c0_i32_0 : i32, i32
  }
  func.func @transform_3(%arg0: i32) -> (i32, i32) {
    %c0_i32 = arith.constant 0 : i32
    %c0_i32_0 = arith.constant 0 : i32
    return %arg0, %c0_i32 : i32, i32
  }
  func.func @transform_4(%arg0: i32) -> (i32, i32) {
    %c0_i32 = arith.constant 0 : i32
    %c0_i32_0 = arith.constant 0 : i32
    %c0_i32_1 = arith.constant 0 : i32
    return %c0_i32, %c0_i32_0 : i32, i32
  }
}

</mosaic_0001>

<llo_original>
// kernel: tpu_custom_call.1
$region0: #{tpu_custom_call.1}
  #allocation0 [shape = 'u32[]', space=smem, size = 0x4, offset = 0x4, fixed_abs, tag = 'smem constant byte address 0x4 - core index']
  #allocation1 [shape = 'u32[144,128]{1,0:T(1,128)}', space=vmem, size = 0x12000, scoped, tag = 'internal scratch']
  #allocation2 [shape = 'f32[1,1]{1,0:T(1,128)}', space=vmem, size = 0x200, scoped, tag = 'scratch operand']
  #allocation3 [shape = 'f32[1,1]{1,0:T(1,128)}', space=vmem, size = 0x200, scoped, tag = 'scratch operand']
  %s0 = inlined_call_operand.vmem [shape: f32[3], index: 0, kind: input, shape index: {}]
  %s1 = inlined_call_operand.hbm [shape: f32[8,32], index: 1, kind: input, shape index: {}]
  %s2 = inlined_call_operand.vmem [shape: s32[8,1], index: 2, kind: input, shape index: {}]
  %s3 = inlined_call_operand.vmem [shape: f32[16,128], index: 3, kind: input, shape index: {}]
  %s4 = inlined_call_operand.hbm [shape: f32[1,1], index: 4, kind: output, shape index: {}]
  %s5 = sld [smem:[#allocation0]]
  $region42: #{tpu_custom_call.1} parent=0
    _
  %s7 = ssub.s32 1, %s5
  %s8 = scalar_select 0, %s7, %s5
  $region1: #{tpu_custom_call.1} parent=0
    #allocation4 [shape = 'u8[512]{0}', space=smem, size = 0x200, scoped, tag = 'input window, operand 0, single buffered']
    #allocation5 [shape = 's32[1]{0}', space=sflag, size = 0x4, scoped, tag = 'scoped memory for tpu_custom_call.1']
    #allocation6 [shape = 's32[1]{0}', space=sflag, size = 0x4, scoped, tag = 'scoped memory for tpu_custom_call.1']
    #allocation7 [shape = 's32[1]{0}', space=sflag, size = 0x4, scoped, tag = 'scoped memory for tpu_custom_call.1']
    #allocation8 [shape = 'u8[4096]{0}', space=vmem, size = 0x1000, scoped, tag = 'input window, operand 1, single buffered']
    #allocation9 [shape = 'u8[512]{0}', space=vmem, size = 0x400, scoped, tag = 'output window, operand 0, single buffered']
    %9 = vsyncpa [#allocation7], 0
    %10 = vsyncpa [#allocation5], 0
    %11 = vsyncpa [#allocation6], 0
    // Predicated region
    $region2: #{tpu_custom_call.1} parent=1 // pred_check
      _
    $region3: #{tpu_custom_call.1} parent=1 // pred_check_branch
      %13 = sbr.rel (0) target = $region5
    $region4: #{tpu_custom_call.1} parent=1 // pred_region
      %s15 = ssub.s32 16, 16
      %16 = vsyncadd [#allocation7], %s15
      %s18 = sshll.u32 %s0, 4
      %s19 = int_to_ptr.vmem [resolvable:$true] %s18
      %21 = dma.vmem_to_smem %s19, 16, [#allocation4], [#allocation7]
    $region5: #{tpu_custom_call.1} parent=1 // pred_fallthru
      _
    // Predicated region
    $region6: #{tpu_custom_call.1} parent=1 // pred_check
      _
    $region7: #{tpu_custom_call.1} parent=1 // pred_check_branch
      %23 = sbr.rel (0) target = $region9
    $region8: #{tpu_custom_call.1} parent=1 // pred_region
      %s25 = ssub.s32 128, 128
      %26 = vsyncadd [#allocation5], %s25
      %s28 = sshll.u32 [#allocation8], 4
      %s29 = int_to_ptr.vmem [resolvable:$true] %s28
      %31 = dma.hbm_to_vmem [thread:$0]  %s1, 128, %s29, [#allocation5]
    $region9: #{tpu_custom_call.1} parent=1 // pred_fallthru
      _
    // Predicated region
    $region10: #{tpu_custom_call.1} parent=1 // pred_check
      _
    $region11: #{tpu_custom_call.1} parent=1 // pred_check_branch
      %33 = sbr.rel (0) target = $region13
    $region12: #{tpu_custom_call.1} parent=1 // pred_region
      _
    $region13: #{tpu_custom_call.1} parent=1 // pred_fallthru
      _
    // Predicated region
    $region14: #{tpu_custom_call.1} parent=1 // pred_check
      _
    $region15: #{tpu_custom_call.1} parent=1 // pred_check_branch
      %35 = sbr.rel (0) target = $region17
    $region16: #{tpu_custom_call.1} parent=1 // pred_region
      _
    $region17: #{tpu_custom_call.1} parent=1 // pred_fallthru
      _
    // Predicated region
    $region18: #{tpu_custom_call.1} parent=1 // pred_check
      _
    $region19: #{tpu_custom_call.1} parent=1 // pred_check_branch
      %37 = sbr.rel (0) target = $region21
    $region20: #{tpu_custom_call.1} parent=1 // pred_region
      %38 = dma.done [#allocation7], 16
    $region21: #{tpu_custom_call.1} parent=1 // pred_fallthru
      _
    // Predicated region
    $region22: #{tpu_custom_call.1} parent=1 // pred_check
      _
    $region23: #{tpu_custom_call.1} parent=1 // pred_check_branch
      %40 = sbr.rel (0) target = $region25
    $region24: #{tpu_custom_call.1} parent=1 // pred_region
      %41 = dma.done [#allocation5], 128
    $region25: #{tpu_custom_call.1} parent=1 // pred_fallthru
      _
    %42 = sfence
    %v43 = vld [vmem:[%s3] sm:$0xff]
    %v44 = vld [vmem:[%s3 + $0x8] sm:$0xff]
    %v45 = vadd.f32 %v43, %v44
    %46 = vadd.xlane.f32.xlu0 %v45
    %v47 = vpop.xlane.xlu0 %46
    %v48 = vrot.slane %v47, 4
    %v49 = vadd.f32 %v47, %v48
    %v50 = vrot.slane %v49, 2
    %v51 = vadd.f32 %v49, %v50
    %v52 = vrot.slane %v51, 1
    %v53 = vadd.f32 %v51, %v52
    %s54 = vtos %v53
    %v55 = vstv %s54
    %p56 = scmp.eq.s32.totalorder 0, 0
    // Predicated region
    $region26: #{tpu_custom_call.1} parent=1 // pred_check
      %p57 = pneg %p56
    $region27: #{tpu_custom_call.1} parent=1 // pred_check_branch
      %59 = sbr.rel (%p57) target = $region29
    $region28: #{tpu_custom_call.1} parent=1 // pred_region
      %vm60 = vcmask 0
      %61 = vst.msk [vmem:[#allocation2] sm:$0x1] %vm60, 0.0
      %v62 = vld [vmem:[#allocation8] sm:$0xff]
      %vm63 = vcmask 261120
      %v64 = vsel %vm63, %v62, -inf
      %65 = vmax.xlane.f32.xlu0 %v64
      %v66 = vpop.xlane.xlu0 %65
      %v67 = vsub.f32 %v62, %v66
      %v68 = vmul.f32 %v67, 1.442695
      %v69 = vpow.pop %v68
      %v70 = vsel %vm63, %v69, 0.0
      %71 = vadd.xlane.f32.xlu0 %v70
      %v72 = vpop.xlane.xlu0 %71
      %v73 = vlog2.pop %v72
      %v74 = vmul.f32 %v73, 0.6931472
      %v75 = vadd.f32 %v66, %v74
      %v76 = vld [vmem:[%s2] sm:$0xff]
      %v77 = vlaneseq
      %v78 = vand.u32 %v77, 127
      %79 = vset.pattern.permute.xlu0 0
      %80 = vperm.xlu0 %79, %v76
      %v81 = vpop.permute.xlu0 %80
      %vm82 = vcmp.eq.s32.totalorder %v78, %v81
      %v83 = vsel %vm82, 1, 0
      %v84 = vcvt.s32.f32 %v83
      %v85 = vmul.f32 %v62, %v84
      %v86 = vsel %vm63, %v85, 0.0
      %87 = vadd.xlane.f32.xlu0 %v86
      %v88 = vpop.xlane.xlu0 %87
      %v89 = vsub.f32 %v75, %v88
      %vm90 = vcmask 7168
      %v91 = vsel %vm90, %v89, 0.0
      %92 = vadd.xlane.f32.xlu0 %v91
      %v93 = vpop.xlane.xlu0 %92
      %v94 = vrot.slane %v93, 4
      %v95 = vadd.f32 %v93, %v94
      %v96 = vrot.slane %v95, 2
      %v97 = vadd.f32 %v95, %v96
      %v98 = vrot.slane %v97, 1
      %v99 = vadd.f32 %v97, %v98
      %s100 = vtos %v99
      %v101 = vstv %s100
      %v102 = vmul.f32 %v62, %v62
      %v103 = vsel %vm63, %v102, 0.0
      %104 = vadd.xlane.f32.xlu0 %v103
      %v105 = vpop.xlane.xlu0 %104
      %v106 = vrot.slane %v105, 4
      %v107 = vadd.f32 %v105, %v106
      %v108 = vrot.slane %v107, 2
      %v109 = vadd.f32 %v107, %v108
      %v110 = vrot.slane %v109, 1
      %v111 = vadd.f32 %v109, %v110
      %s112 = vtos %v111
      %v113 = vstv %s112
      %s114 = sld [smem:[#allocation4 + $0x1]]
      %v115 = vmul.f32 %v101, 0.125
      %v116 = vmul.f32 %v113, 0.00390625
      %v117 = vstv %s114
      %v118 = vmul.f32 %v117, %v116
      %v119 = vadd.f32 %v115, %v118
      %120 = vst.msk [vmem:[#allocation3] sm:$0x1] %vm60, %v119
    $region29: #{tpu_custom_call.1} parent=1 // pred_fallthru
      _
    %v121 = vld [vmem:[#allocation2] sm:$0x1]
    %v122 = vadd.f32 %v121, %v55
    %vm123 = vcmask 0
    %124 = vst.msk [vmem:[#allocation2] sm:$0x1] %vm123, %v122
    // Predicated region
    $region30: #{tpu_custom_call.1} parent=1 // pred_check
      %p125 = pneg %p56
    $region31: #{tpu_custom_call.1} parent=1 // pred_check_branch
      %127 = sbr.rel (%p125) target = $region33
    $region32: #{tpu_custom_call.1} parent=1 // pred_region
      %s128 = sld [smem:[#allocation4]]
      %s129 = sld [smem:[#allocation4 + $0x2]]
      %v130 = vld [vmem:[#allocation3] sm:$0x1]
      %v131 = vld [vmem:[#allocation2] sm:$0x1]
      %v132 = vstv %s129
      %v133 = vmul.f32 %v131, %v132
      %v134 = vstv %s128
      %v135 = vmul.f32 %v134, %v133
      %v136 = vadd.f32 %v130, %v135
      %137 = vst.msk [vmem:[#allocation9] sm:$0x1] %vm123, %v136
    $region33: #{tpu_custom_call.1} parent=1 // pred_fallthru
      _
    // Predicated region
    $region34: #{tpu_custom_call.1} parent=1 // pred_check
      _
    $region35: #{tpu_custom_call.1} parent=1 // pred_check_branch
      %139 = sbr.rel (0) target = $region37
    $region36: #{tpu_custom_call.1} parent=1 // pred_region
      %s141 = ssub.s32 16, 16
      %142 = vsyncadd [#allocation6], %s141
      %s144 = sshll.u32 [#allocation9], 4
      %s145 = int_to_ptr.vmem [resolvable:$true] %s144
      %147 = dma.vmem_to_hbm [thread:$0]  %s145, 16, %s4, [#allocation6]
    $region37: #{tpu_custom_call.1} parent=1 // pred_fallthru
      _
    // Predicated region
    $region38: #{tpu_custom_call.1} parent=1 // pred_check
      _
    $region39: #{tpu_custom_call.1} parent=1 // pred_check_branch
      %149 = sbr.rel (0) target = $region41
    $region40: #{tpu_custom_call.1} parent=1 // pred_region
      %150 = dma.done [#allocation6], 16
    $region41: #{tpu_custom_call.1} parent=1 // pred_fallthru
      _
    %151 = vsyncpa [#allocation5], 1
    %152 = vsyncpa [#allocation6], 1
    %153 = vsyncpa [#allocation7], 1

</llo_original>
